<compile_context>
chip_gen: v6e
topology: v6e:2x2x1
jax: 0.10.0
libtpu: 0.0.40
codegen_flags: <defaults>
</compile_context>

<pallas_src>
import numpy as np
import jax
import jax.numpy as jnp
from jax.experimental import pallas as pl
from jax.experimental.pallas import tpu as pltpu


# ---------------------------------------------------------------------------
# Host-side constants: 1-D interpolation matrices for x2 bilinear upsample
# with align_corners=True (PyTorch nn.Upsample semantics).
# ---------------------------------------------------------------------------
def _bilinear_x2_matrix(n_in: int) -> np.ndarray:
    """Returns (2*n_in, n_in) f32 matrix M with  out = M @ in  along one axis."""
    n_out = 2 * n_in
    m = np.zeros((n_out, n_in), dtype=np.float32)
    if n_in == 1:
        m[:, 0] = 1.0
        return m
    src = np.arange(n_out, dtype=np.float64) * (n_in - 1) / (n_out - 1)
    i0 = np.clip(np.floor(src).astype(np.int64), 0, n_in - 2)
    frac = (src - i0).astype(np.float32)
    rows = np.arange(n_out)
    m[rows, i0] += (1.0 - frac)
    m[rows, i0 + 1] += frac
    return m


# ---------------------------------------------------------------------------
# Kernel: pure elementwise scaling, lane-dense blocks.
# ---------------------------------------------------------------------------
def refine_kernel(sc_hi_ref, sc_lo_ref, x1_ref, x2_ref, x3_ref,
                  o1_ref, o2_ref, o3_ref):
    # sc_hi_ref: (1, 4HW) f32 = 1 + upsampled attention (flattened spatial)
    # sc_lo_ref: (1,  HW) f32 = 1 + attention           (flattened spatial)
    # x1_ref/x2_ref/o1_ref/o2_ref: (c_tile, 4HW);  x3_ref/o3_ref: (c_tile, HW)
    sc_hi = sc_hi_ref[...]
    sc_lo = sc_lo_ref[...]
    o1_ref[...] = (x1_ref[...] * sc_hi).astype(o1_ref.dtype)
    o2_ref[...] = (x2_ref[...] * sc_hi).astype(o2_ref.dtype)
    o3_ref[...] = (x3_ref[...] * sc_lo).astype(o3_ref.dtype)


# ---------------------------------------------------------------------------
# Wrapper
# ---------------------------------------------------------------------------
def _pick_c_tile(C, per_ch_bytes, budget_bytes=4 << 20):
    # Legal channel tiles (sublane dim of the 2-D blocks): multiples of 8 that
    # divide C, or the full channel extent.
    cand = [d for d in range(8, C + 1, 8) if C % d == 0]
    cand.append(C)
    fitting = [d for d in cand if d * per_ch_bytes <= budget_bytes]
    return max(fitting) if fitting else min(cand)


@jax.jit
def refine(attention, x1, x2, x3):
    B, Ca, H, W = attention.shape
    assert Ca == 1, "Refine kernel assumes a single-channel attention map"
    Bx, C, H2, W2 = x1.shape
    assert Bx == B and (H2, W2) == (2 * H, 2 * W)
    assert x2.shape == x1.shape
    assert x3.shape == (B, C, H, W)

    S_hi = 4 * H * W
    S_lo = H * W

    # Tiny shared scale maps (B x spatial, f32), computed once per batch.
    att = attention[:, 0].astype(jnp.float32)                    # (B, H, W)
    wh = jnp.asarray(_bilinear_x2_matrix(H))                     # (2H, H)
    ww = jnp.asarray(_bilinear_x2_matrix(W))                     # (2W, W)
    up = jnp.einsum('bhw,qw->bhq', att, ww,
                    preferred_element_type=jnp.float32)          # (B, H, 2W)
    up = jnp.einsum('ph,bhq->bpq', wh, up,
                    preferred_element_type=jnp.float32)          # (B, 2H, 2W)
    scale_hi = (1.0 + up).reshape(B, 1, S_hi)                    # (B, 1, 4HW)
    scale_lo = (1.0 + att).reshape(B, 1, S_lo)                   # (B, 1,  HW)

    # Lane-dense views of the heavy tensors (free reshapes, contiguous).
    x1f = x1.reshape(B, C, S_hi)
    x2f = x2.reshape(B, C, S_hi)
    x3f = x3.reshape(B, C, S_lo)

    itemsize = jnp.dtype(x1.dtype).itemsize
    per_ch = itemsize * (4 * S_hi + 2 * S_lo)     # x1,x2 in+out  +  x3 in+out
    c_tile = _pick_c_tile(C, per_ch)
    grid = (B, C // c_tile)

    hi_spec = pl.BlockSpec((None, c_tile, S_hi), lambda b, c: (b, c, 0))
    lo_spec = pl.BlockSpec((None, c_tile, S_lo), lambda b, c: (b, c, 0))
    sc_hi_spec = pl.BlockSpec((None, 1, S_hi), lambda b, c: (b, 0, 0))
    sc_lo_spec = pl.BlockSpec((None, 1, S_lo), lambda b, c: (b, 0, 0))

    # Double-buffered pipeline footprint (+ headroom); clamp to v7x physical.
    needed = 2 * (c_tile * per_ch + 4 * (S_hi + S_lo)) + (1 << 20)
    vmem_limit = int(min(64 << 20, max(needed, 16 << 20)))

    nbytes = lambda a: int(a.size) * jnp.dtype(a.dtype).itemsize
    bytes_accessed = (2 * (nbytes(x1) + nbytes(x2) + nbytes(x3))
                      + 4 * B * (S_hi + S_lo))
    flops = int(x1.size) + int(x2.size) + int(x3.size)

    o1, o2, o3 = pl.pallas_call(
        refine_kernel,
        out_shape=(jax.ShapeDtypeStruct((B, C, S_hi), x1.dtype),
                   jax.ShapeDtypeStruct((B, C, S_hi), x2.dtype),
                   jax.ShapeDtypeStruct((B, C, S_lo), x3.dtype)),
        grid=grid,
        in_specs=[sc_hi_spec, sc_lo_spec, hi_spec, hi_spec, lo_spec],
        out_specs=(hi_spec, hi_spec, lo_spec),
        compiler_params=pltpu.CompilerParams(
            dimension_semantics=("parallel", "parallel"),
            vmem_limit_bytes=vmem_limit),
        cost_estimate=pl.CostEstimate(flops=flops, transcendentals=0,
                                      bytes_accessed=int(bytes_accessed)),
    )(scale_hi, scale_lo, x1f, x2f, x3f)

    return (o1.reshape(x1.shape), o2.reshape(x2.shape), o3.reshape(x3.shape))


# ---------------------------------------------------------------------------
# Pure-JAX reference (gather-based bilinear, align_corners=True)
# ---------------------------------------------------------------------------
def refine_ref(attention, x1, x2, x3):
    B, Ca, H, W = attention.shape

    def axis_interp(n_in):
        n_out = 2 * n_in
        if n_in == 1:
            z = np.zeros(n_out, np.int64)
            return z, z, np.zeros(n_out, np.float32)
        src = np.arange(n_out, dtype=np.float64) * (n_in - 1) / (n_out - 1)
        i0 = np.clip(np.floor(src).astype(np.int64), 0, n_in - 2)
        frac = (src - i0).astype(np.float32)
        return i0, i0 + 1, frac

    h0, h1, fh = axis_interp(H)
    w0, w1, fw = axis_interp(W)
    a = attention
    ah = (a[:, :, h0, :] * (1.0 - fh)[None, None, :, None]
          + a[:, :, h1, :] * fh[None, None, :, None])
    up = (ah[:, :, :, w0] * (1.0 - fw)[None, None, None, :]
          + ah[:, :, :, w1] * fw[None, None, None, :])
    return x1 + x1 * up, x2 + x2 * up, x3 + x3 * a


if __name__ == "__main__":
    B, C, H, W = 2, 4, 16, 16
    key = jax.random.PRNGKey(0)
    ka, k1, k2, k3 = jax.random.split(key, 4)

    attention = jax.nn.sigmoid(jax.random.normal(ka, (B, 1, H, W), dtype=jnp.float32))
    x1 = jax.random.normal(k1, (B, C, 2 * H, 2 * W), dtype=jnp.float32)
    x2 = jax.random.normal(k2, (B, C, 2 * H, 2 * W), dtype=jnp.float32)
    x3 = jax.random.normal(k3, (B, C, H, W), dtype=jnp.float32)

    y1, y2, y3 = refine(attention, x1, x2, x3)
    jax.block_until_ready((y1, y2, y3))

    r1, r2, r3 = refine_ref(attention, x1, x2, x3)
    assert y1.shape == x1.shape and y2.shape == x2.shape and y3.shape == x3.shape
    for got, want in ((y1, r1), (y2, r2), (y3, r3)):
        assert jnp.allclose(got, want, atol=1e-5, rtol=1e-5), \
            float(jnp.max(jnp.abs(got - want)))

    print("KERNEL_OK")
</pallas_src>

<mosaic_0001>
module attributes {stable_mosaic.version = 11 : i64} {
  func.func @refine_kernel(%arg0: i32, %arg1: i32, %arg2: memref<1x1x1024xf32, #tpu.memory_space<vmem>>, %arg3: memref<1x1x256xf32, #tpu.memory_space<vmem>>, %arg4: memref<1x4x1024xf32, #tpu.memory_space<vmem>>, %arg5: memref<1x4x1024xf32, #tpu.memory_space<vmem>>, %arg6: memref<1x4x256xf32, #tpu.memory_space<vmem>>, %arg7: memref<1x4x1024xf32, #tpu.memory_space<vmem>>, %arg8: memref<1x4x1024xf32, #tpu.memory_space<vmem>>, %arg9: memref<1x4x256xf32, #tpu.memory_space<vmem>>) attributes {dimension_semantics = [#tpu.dimension_semantics<parallel>, #tpu.dimension_semantics<parallel>], iteration_bounds = array<i64: 2, 1>, scalar_prefetch = 0 : i64, scratch_operands = 0 : i64, tpu.core_type = #tpu.core_type<tc>, window_params = [{transform_indices = @transform_0, window_bounds = array<i64: 1, 1, 1024>}, {transform_indices = @transform_1, window_bounds = array<i64: 1, 1, 256>}, {transform_indices = @transform_2, window_bounds = array<i64: 1, 4, 1024>}, {transform_indices = @transform_3, window_bounds = array<i64: 1, 4, 1024>}, {transform_indices = @transform_4, window_bounds = array<i64: 1, 4, 256>}, {transform_indices = @transform_5, window_bounds = array<i64: 1, 4, 1024>}, {transform_indices = @transform_6, window_bounds = array<i64: 1, 4, 1024>}, {transform_indices = @transform_7, window_bounds = array<i64: 1, 4, 256>}]} {
    %c0 = arith.constant 0 : index
    %c0_0 = arith.constant 0 : index
    %c0_1 = arith.constant 0 : index
    %0 = vector.load %arg2[%c0, %c0_0, %c0_1] : memref<1x1x1024xf32, #tpu.memory_space<vmem>>, vector<1x1x1024xf32>
    %1 = vector.shape_cast %0 : vector<1x1x1024xf32> to vector<1x1024xf32>
    %c0_2 = arith.constant 0 : index
    %c0_3 = arith.constant 0 : index
    %c0_4 = arith.constant 0 : index
    %2 = vector.load %arg3[%c0_2, %c0_3, %c0_4] : memref<1x1x256xf32, #tpu.memory_space<vmem>>, vector<1x1x256xf32>
    %3 = vector.shape_cast %2 : vector<1x1x256xf32> to vector<1x256xf32>
    %c0_5 = arith.constant 0 : index
    %c0_6 = arith.constant 0 : index
    %c0_7 = arith.constant 0 : index
    %4 = vector.load %arg4[%c0_5, %c0_6, %c0_7] : memref<1x4x1024xf32, #tpu.memory_space<vmem>>, vector<1x4x1024xf32>
    %5 = vector.shape_cast %4 : vector<1x4x1024xf32> to vector<4x1024xf32>
    %6 = vector.broadcast %1 : vector<1x1024xf32> to vector<4x1024xf32>
    %7 = arith.mulf %5, %6 : vector<4x1024xf32>
    %c0_8 = arith.constant 0 : index
    %c0_9 = arith.constant 0 : index
    %c0_10 = arith.constant 0 : index
    %8 = vector.load %arg7[%c0_8, %c0_9, %c0_10] : memref<1x4x1024xf32, #tpu.memory_space<vmem>>, vector<1x4x1024xf32>
    %9 = vector.shape_cast %8 : vector<1x4x1024xf32> to vector<4x1024xf32>
    %10 = vector.shape_cast %7 : vector<4x1024xf32> to vector<1x4x1024xf32>
    tpu.vector_store %arg7[%c0_8, %c0_9, %c0_10], %10 {strides = array<i32>} : memref<1x4x1024xf32, #tpu.memory_space<vmem>>, vector<1x4x1024xf32>,
    %c0_11 = arith.constant 0 : index
    %c0_12 = arith.constant 0 : index
    %c0_13 = arith.constant 0 : index
    %11 = vector.load %arg5[%c0_11, %c0_12, %c0_13] : memref<1x4x1024xf32, #tpu.memory_space<vmem>>, vector<1x4x1024xf32>
    %12 = vector.shape_cast %11 : vector<1x4x1024xf32> to vector<4x1024xf32>
    %13 = vector.broadcast %1 : vector<1x1024xf32> to vector<4x1024xf32>
    %14 = arith.mulf %12, %13 : vector<4x1024xf32>
    %c0_14 = arith.constant 0 : index
    %c0_15 = arith.constant 0 : index
    %c0_16 = arith.constant 0 : index
    %15 = vector.load %arg8[%c0_14, %c0_15, %c0_16] : memref<1x4x1024xf32, #tpu.memory_space<vmem>>, vector<1x4x1024xf32>
    %16 = vector.shape_cast %15 : vector<1x4x1024xf32> to vector<4x1024xf32>
    %17 = vector.shape_cast %14 : vector<4x1024xf32> to vector<1x4x1024xf32>
    tpu.vector_store %arg8[%c0_14, %c0_15, %c0_16], %17 {strides = array<i32>} : memref<1x4x1024xf32, #tpu.memory_space<vmem>>, vector<1x4x1024xf32>,
    %c0_17 = arith.constant 0 : index
    %c0_18 = arith.constant 0 : index
    %c0_19 = arith.constant 0 : index
    %18 = vector.load %arg6[%c0_17, %c0_18, %c0_19] : memref<1x4x256xf32, #tpu.memory_space<vmem>>, vector<1x4x256xf32>
    %19 = vector.shape_cast %18 : vector<1x4x256xf32> to vector<4x256xf32>
    %20 = vector.broadcast %3 : vector<1x256xf32> to vector<4x256xf32>
    %21 = arith.mulf %19, %20 : vector<4x256xf32>
    %c0_20 = arith.constant 0 : index
    %c0_21 = arith.constant 0 : index
    %c0_22 = arith.constant 0 : index
    %22 = vector.load %arg9[%c0_20, %c0_21, %c0_22] : memref<1x4x256xf32, #tpu.memory_space<vmem>>, vector<1x4x256xf32>
    %23 = vector.shape_cast %22 : vector<1x4x256xf32> to vector<4x256xf32>
    %24 = vector.shape_cast %21 : vector<4x256xf32> to vector<1x4x256xf32>
    tpu.vector_store %arg9[%c0_20, %c0_21, %c0_22], %24 {strides = array<i32>} : memref<1x4x256xf32, #tpu.memory_space<vmem>>, vector<1x4x256xf32>,
    return
  }
  func.func @transform_0(%arg0: i32, %arg1: i32) -> (i32, i32, i32) {
    %c0_i32 = arith.constant 0 : i32
    %c0_i32_0 = arith.constant 0 : i32
    %c0_i32_1 = arith.constant 0 : i32
    return %arg0, %c0_i32, %c0_i32_0 : i32, i32, i32
  }
  func.func @transform_1(%arg0: i32, %arg1: i32) -> (i32, i32, i32) {
    %c0_i32 = arith.constant 0 : i32
    %c0_i32_0 = arith.constant 0 : i32
    %c0_i32_1 = arith.constant 0 : i32
    return %arg0, %c0_i32, %c0_i32_0 : i32, i32, i32
  }
  func.func @transform_2(%arg0: i32, %arg1: i32) -> (i32, i32, i32) {
    %c0_i32 = arith.constant 0 : i32
    %c0_i32_0 = arith.constant 0 : i32
    return %arg0, %arg1, %c0_i32 : i32, i32, i32
  }
  func.func @transform_3(%arg0: i32, %arg1: i32) -> (i32, i32, i32) {
    %c0_i32 = arith.constant 0 : i32
    %c0_i32_0 = arith.constant 0 : i32
    return %arg0, %arg1, %c0_i32 : i32, i32, i32
  }
  func.func @transform_4(%arg0: i32, %arg1: i32) -> (i32, i32, i32) {
    %c0_i32 = arith.constant 0 : i32
    %c0_i32_0 = arith.constant 0 : i32
    return %arg0, %arg1, %c0_i32 : i32, i32, i32
  }
  func.func @transform_5(%arg0: i32, %arg1: i32) -> (i32, i32, i32) {
    %c0_i32 = arith.constant 0 : i32
    %c0_i32_0 = arith.constant 0 : i32
    return %arg0, %arg1, %c0_i32 : i32, i32, i32
  }
  func.func @transform_6(%arg0: i32, %arg1: i32) -> (i32, i32, i32) {
    %c0_i32 = arith.constant 0 : i32
    %c0_i32_0 = arith.constant 0 : i32
    return %arg0, %arg1, %c0_i32 : i32, i32, i32
  }
  func.func @transform_7(%arg0: i32, %arg1: i32) -> (i32, i32, i32) {
    %c0_i32 = arith.constant 0 : i32
    %c0_i32_0 = arith.constant 0 : i32
    return %arg0, %arg1, %c0_i32 : i32, i32, i32
  }
}

</mosaic_0001>

<llo_original>
// kernel: refine.1
$region0: #{refine.1}
  #allocation0 [shape = 'u32[]', space=smem, size = 0x4, offset = 0x4, fixed_abs, tag = 'smem constant byte address 0x4 - core index']
  #allocation1 [shape = 'u32[144,128]{1,0:T(1,128)}', space=vmem, size = 0x12000, scoped, tag = 'internal scratch']
  %s0 = inlined_call_operand.vmem [shape: f32[2,1,1024], index: 0, kind: input, shape index: {}]
  %s1 = inlined_call_operand.vmem [shape: f32[2,1,256], index: 1, kind: input, shape index: {}]
  %s2 = inlined_call_operand.vmem [shape: f32[2,4,1024], index: 2, kind: input, shape index: {}]
  %s3 = inlined_call_operand.vmem [shape: f32[2,4,1024], index: 3, kind: input, shape index: {}]
  %s4 = inlined_call_operand.vmem [shape: f32[2,4,256], index: 4, kind: input, shape index: {}]
  %s5 = inlined_call_operand.vmem [shape: f32[2,4,1024], index: 5, kind: output, shape index: {0}]
  %s6 = inlined_call_operand.vmem [shape: f32[2,4,1024], index: 6, kind: output, shape index: {1}]
  %s7 = inlined_call_operand.vmem [shape: f32[2,4,256], index: 7, kind: output, shape index: {2}]
  %8 = xla_tuple %s5, %s6, %s7
  %s9 = sld [smem:[#allocation0]]
  $region69: #{refine.1} parent=0
    _
  %s11 = ssub.s32 1, %s9
  %s12 = scalar_select 0, %s11, %s9
  loop: start=0, step=1, limit=4
  $region2: #{refine.1} parent=0 // loop_pre_header
    _
  $region3: #{refine.1} parent=0 // loop_header
    %s14 = sphi 0, %s18
    %p15 = scmp.ge.s32.totalorder %s14, 4
    %s21 = sphi 0, %s33
    %s22 = sphi 0, %s29
    %s23 = sphi 0, %s21
    %s24 = sphi 0, %s22
    %s25 = sphi 0, %s23
    %s26 = sphi 0, %s24
    %s36 = sphi 0, %s38
    %s39 = sphi 0, %s36
    %s40 = sphi 0, %s39
    %s56 = sphi 0, %s40
    %s62 = sphi 0, %s64
    %s65 = sphi 0, %s62
    %s66 = sphi 0, %s65
    %s82 = sphi 0, %s66
    %s90 = sphi 0, %s92
    %s93 = sphi 0, %s90
    %s94 = sphi 0, %s93
    %s110 = sphi 0, %s94
    %s118 = sphi 0, %s120
    %s121 = sphi 0, %s118
    %s122 = sphi 0, %s121
    %s138 = sphi 0, %s122
    %s146 = sphi 0, %s148
    %s149 = sphi 0, %s146
    %s150 = sphi 0, %s149
    %s166 = sphi 0, %s150
    %s174 = sphi 0, %s176
    %s177 = sphi 0, %s174
    %s178 = sphi 0, %s177
    %s194 = sphi 0, %s178
    %s202 = sphi 0, %s204
    %s205 = sphi 0, %s202
    %s206 = sphi 0, %s205
    %s222 = sphi 0, %s206
    %s230 = sphi 0, %s232
    %s233 = sphi 0, %s230
    %s234 = sphi 0, %s233
    %s250 = sphi 0, %s234
  $region4: #{refine.1} parent=0 // loop_header_branch
    %17 = sbr.rel (%p15) target = $region8
  $region5: #{refine.1} parent=0 // loop_body
    %s19 = ssub.s32 %s14, 1
    %s20 = ssub.s32 %s14, 2
    %s27 = sadd.s32 1, %s22
    %p28 = scmp.ge.s32.totalorder %s27, 1
    %s29 = scalar_select %p28, 0, %s27
    %s30 = sadd.s32 1, %s21
    %s31 = scalar_select %p28, %s30, %s21
    %p32 = scmp.ge.s32.totalorder %s31, 2
    %s33 = scalar_select %p32, 0, %s31
    %s34 = ssub.s32 %s21, %s33
    %p35 = scmp.eq.s32.totalorder %s34, 0
    %s37 = sadd.s32 %s36, 1
    %s38 = scalar_select %p35, %s36, %s37
    %p41 = pneg %p35
    %p42 = scmp.eq.s32.totalorder %s14, 1
    %p43 = por %p41, %p42
    %p44 = scmp.ne.s32.totalorder %s36, %s39
    %p45 = scmp.eq.s32.totalorder %s14, 0
    %p46 = por %p44, %p45
    %p47 = scmp.ne.s32.totalorder %s36, %s39
    %p48 = scmp.eq.s32.totalorder %s19, 1
    %p49 = por %p47, %p48
    %p50 = scmp.ne.s32.totalorder %s39, %s40
    %p51 = scmp.eq.s32.totalorder %s19, 0
    %p52 = por %p50, %p51
    %p53 = scmp.ne.s32.totalorder %s39, %s40
    %p54 = scmp.eq.s32.totalorder %s20, 1
    %p55 = por %p53, %p54
    %p57 = scmp.ne.s32.totalorder %s40, %s56
    %p58 = scmp.eq.s32.totalorder %s20, 0
    %p59 = por %p57, %p58
    %s60 = ssub.s32 %s21, %s33
    %p61 = scmp.eq.s32.totalorder %s60, 0
    %s63 = sadd.s32 %s62, 1
    %s64 = scalar_select %p61, %s62, %s63
    %p67 = pneg %p61
    %p68 = scmp.eq.s32.totalorder %s14, 1
    %p69 = por %p67, %p68
    %p70 = scmp.ne.s32.totalorder %s62, %s65
    %p71 = scmp.eq.s32.totalorder %s14, 0
    %p72 = por %p70, %p71
    %p73 = scmp.ne.s32.totalorder %s62, %s65
    %p74 = scmp.eq.s32.totalorder %s19, 1
    %p75 = por %p73, %p74
    %p76 = scmp.ne.s32.totalorder %s65, %s66
    %p77 = scmp.eq.s32.totalorder %s19, 0
    %p78 = por %p76, %p77
    %p79 = scmp.ne.s32.totalorder %s65, %s66
    %p80 = scmp.eq.s32.totalorder %s20, 1
    %p81 = por %p79, %p80
    %p83 = scmp.ne.s32.totalorder %s66, %s82
    %p84 = scmp.eq.s32.totalorder %s20, 0
    %p85 = por %p83, %p84
    %s86 = ssub.s32 %s21, %s33
    %s87 = ssub.s32 %s22, %s29
    %s88 = sor.u32 %s86, %s87
    %p89 = scmp.eq.s32.totalorder %s88, 0
    %s91 = sadd.s32 %s90, 1
    %s92 = scalar_select %p89, %s90, %s91
    %p95 = pneg %p89
    %p96 = scmp.eq.s32.totalorder %s14, 1
    %p97 = por %p95, %p96
    %p98 = scmp.ne.s32.totalorder %s90, %s93
    %p99 = scmp.eq.s32.totalorder %s14, 0
    %p100 = por %p98, %p99
    %p101 = scmp.ne.s32.totalorder %s90, %s93
    %p102 = scmp.eq.s32.totalorder %s19, 1
    %p103 = por %p101, %p102
    %p104 = scmp.ne.s32.totalorder %s93, %s94
    %p105 = scmp.eq.s32.totalorder %s19, 0
    %p106 = por %p104, %p105
    %p107 = scmp.ne.s32.totalorder %s93, %s94
    %p108 = scmp.eq.s32.totalorder %s20, 1
    %p109 = por %p107, %p108
    %p111 = scmp.ne.s32.totalorder %s94, %s110
    %p112 = scmp.eq.s32.totalorder %s20, 0
    %p113 = por %p111, %p112
    %s114 = ssub.s32 %s21, %s33
    %s115 = ssub.s32 %s22, %s29
    %s116 = sor.u32 %s114, %s115
    %p117 = scmp.eq.s32.totalorder %s116, 0
    %s119 = sadd.s32 %s118, 1
    %s120 = scalar_select %p117, %s118, %s119
    %p123 = pneg %p117
    %p124 = scmp.eq.s32.totalorder %s14, 1
    %p125 = por %p123, %p124
    %p126 = scmp.ne.s32.totalorder %s118, %s121
    %p127 = scmp.eq.s32.totalorder %s14, 0
    %p128 = por %p126, %p127
    %p129 = scmp.ne.s32.totalorder %s118, %s121
    %p130 = scmp.eq.s32.totalorder %s19, 1
    %p131 = por %p129, %p130
    %p132 = scmp.ne.s32.totalorder %s121, %s122
    %p133 = scmp.eq.s32.totalorder %s19, 0
    %p134 = por %p132, %p133
    %p135 = scmp.ne.s32.totalorder %s121, %s122
    %p136 = scmp.eq.s32.totalorder %s20, 1
    %p137 = por %p135, %p136
    %p139 = scmp.ne.s32.totalorder %s122, %s138
    %p140 = scmp.eq.s32.totalorder %s20, 0
    %p141 = por %p139, %p140
    %s142 = ssub.s32 %s21, %s33
    %s143 = ssub.s32 %s22, %s29
    %s144 = sor.u32 %s142, %s143
    %p145 = scmp.eq.s32.totalorder %s144, 0
    %s147 = sadd.s32 %s146, 1
    %s148 = scalar_select %p145, %s146, %s147
    %p151 = pneg %p145
    %p152 = scmp.eq.s32.totalorder %s14, 1
    %p153 = por %p151, %p152
    %p154 = scmp.ne.s32.totalorder %s146, %s149
    %p155 = scmp.eq.s32.totalorder %s14, 0
    %p156 = por %p154, %p155
    %p157 = scmp.ne.s32.totalorder %s146, %s149
    %p158 = scmp.eq.s32.totalorder %s19, 1
    %p159 = por %p157, %p158
    %p160 = scmp.ne.s32.totalorder %s149, %s150
    %p161 = scmp.eq.s32.totalorder %s19, 0
    %p162 = por %p160, %p161
    %p163 = scmp.ne.s32.totalorder %s149, %s150
    %p164 = scmp.eq.s32.totalorder %s20, 1
    %p165 = por %p163, %p164
    %p167 = scmp.ne.s32.totalorder %s150, %s166
    %p168 = scmp.eq.s32.totalorder %s20, 0
    %p169 = por %p167, %p168
    %s170 = ssub.s32 %s21, %s33
    %s171 = ssub.s32 %s22, %s29
    %s172 = sor.u32 %s170, %s171
    %p173 = scmp.eq.s32.totalorder %s172, 0
    %s175 = sadd.s32 %s174, 1
    %s176 = scalar_select %p173, %s174, %s175
    %p179 = pneg %p173
    %p180 = scmp.eq.s32.totalorder %s14, 1
    %p181 = por %p179, %p180
    %p182 = scmp.ne.s32.totalorder %s174, %s177
    %p183 = scmp.eq.s32.totalorder %s14, 0
    %p184 = por %p182, %p183
    %p185 = scmp.ne.s32.totalorder %s174, %s177
    %p186 = scmp.eq.s32.totalorder %s19, 1
    %p187 = por %p185, %p186
    %p188 = scmp.ne.s32.totalorder %s177, %s178
    %p189 = scmp.eq.s32.totalorder %s19, 0
    %p190 = por %p188, %p189
    %p191 = scmp.ne.s32.totalorder %s177, %s178
    %p192 = scmp.eq.s32.totalorder %s20, 1
    %p193 = por %p191, %p192
    %p195 = scmp.ne.s32.totalorder %s178, %s194
    %p196 = scmp.eq.s32.totalorder %s20, 0
    %p197 = por %p195, %p196
    %s198 = ssub.s32 %s21, %s33
    %s199 = ssub.s32 %s22, %s29
    %s200 = sor.u32 %s198, %s199
    %p201 = scmp.eq.s32.totalorder %s200, 0
    %s203 = sadd.s32 %s202, 1
    %s204 = scalar_select %p201, %s202, %s203
    %p207 = pneg %p201
    %p208 = scmp.eq.s32.totalorder %s14, 1
    %p209 = por %p207, %p208
    %p210 = scmp.ne.s32.totalorder %s202, %s205
    %p211 = scmp.eq.s32.totalorder %s14, 0
    %p212 = por %p210, %p211
    %p213 = scmp.ne.s32.totalorder %s202, %s205
    %p214 = scmp.eq.s32.totalorder %s19, 1
    %p215 = por %p213, %p214
    %p216 = scmp.ne.s32.totalorder %s205, %s206
    %p217 = scmp.eq.s32.totalorder %s19, 0
    %p218 = por %p216, %p217
    %p219 = scmp.ne.s32.totalorder %s205, %s206
    %p220 = scmp.eq.s32.totalorder %s20, 1
    %p221 = por %p219, %p220
    %p223 = scmp.ne.s32.totalorder %s206, %s222
    %p224 = scmp.eq.s32.totalorder %s20, 0
    %p225 = por %p223, %p224
    %s226 = ssub.s32 %s21, %s33
    %s227 = ssub.s32 %s22, %s29
    %s228 = sor.u32 %s226, %s227
    %p229 = scmp.eq.s32.totalorder %s228, 0
    %s231 = sadd.s32 %s230, 1
    %s232 = scalar_select %p229, %s230, %s231
    %p235 = pneg %p229
    %p236 = scmp.eq.s32.totalorder %s14, 1
    %p237 = por %p235, %p236
    %p238 = scmp.ne.s32.totalorder %s230, %s233
    %p239 = scmp.eq.s32.totalorder %s14, 0
    %p240 = por %p238, %p239
    %p241 = scmp.ne.s32.totalorder %s230, %s233
    %p242 = scmp.eq.s32.totalorder %s19, 1
    %p243 = por %p241, %p242
    %p244 = scmp.ne.s32.totalorder %s233, %s234
    %p245 = scmp.eq.s32.totalorder %s19, 0
    %p246 = por %p244, %p245
    %p247 = scmp.ne.s32.totalorder %s233, %s234
    %p248 = scmp.eq.s32.totalorder %s20, 1
    %p249 = por %p247, %p248
    %p251 = scmp.ne.s32.totalorder %s234, %s250
    %p252 = scmp.eq.s32.totalorder %s20, 0
    %p253 = por %p251, %p252
    %p254 = scmp.le.s32.totalorder 1, %s14
    %p255 = scmp.lt.s32.totalorder %s14, 3
    %p256 = pnand %p254, %p255
    %p257 = pneg %p256
    // Predicated region
    $region9: #{refine.1} parent=5 // pred_check
      _
    $region10: #{refine.1} parent=5 // pred_check_branch
      %259 = sbr.rel (%p256) target = $region12
    $region11: #{refine.1} parent=5 // pred_region
      %s260 = ssub.s32 %s14, 1
    $region12: #{refine.1} parent=5 // pred_fallthru
      _
    %p261 = scmp.lt.s32.totalorder %s14, 2
    // Predicated region
    $region13: #{refine.1} parent=5 // pred_check
      %p262 = pneg %p261
    $region14: #{refine.1} parent=5 // pred_check_branch
      %264 = sbr.rel (%p262) target = $region16
    $region15: #{refine.1} parent=5 // pred_region
      // Predicated region
      $region17: #{refine.1} parent=15 // pred_check
        %p265 = pneg %p46
      $region18: #{refine.1} parent=15 // pred_check_branch
        %267 = sbr.rel (%p265) target = $region20
      $region19: #{refine.1} parent=15 // pred_region
        %p268 = scmp.lt.s32.totalorder %s21, 1
        %s269 = scalar_select %p268, %s21, 1
        %s270 = smul.addr %s269, 8
        %s271 = scalar_lea.vmem %s0, %s270
      $region20: #{refine.1} parent=15 // pred_fallthru
        _
      // Predicated region
      $region21: #{refine.1} parent=15 // pred_check
        %p272 = pneg %p72
      $region22: #{refine.1} parent=15 // pred_check_branch
        %274 = sbr.rel (%p272) target = $region24
      $region23: #{refine.1} parent=15 // pred_region
        %p275 = scmp.lt.s32.totalorder %s21, 1
        %s276 = scalar_select %p275, %s21, 1
        %s277 = smul.addr %s276, 2
        %s278 = scalar_lea.vmem %s1, %s277
      $region24: #{refine.1} parent=15 // pred_fallthru
        _
      // Predicated region
      $region25: #{refine.1} parent=15 // pred_check
        %p279 = pneg %p100
      $region26: #{refine.1} parent=15 // pred_check_branch
        %281 = sbr.rel (%p279) target = $region28
      $region27: #{refine.1} parent=15 // pred_region
        %p282 = scmp.lt.s32.totalorder %s21, 1
        %s283 = scalar_select %p282, %s21, 1
        %p284 = scmp.lt.s32.totalorder %s22, 0
        %s285 = scalar_select %p284, %s22, 0
        %s286 = smul.addr %s285, 8
        %s287 = smul.addr %s283, 8
        %s288 = sadd.s32 %s286, %s287
        %s289 = smul.addr %s288, 4
        %s290 = scalar_lea.vmem %s2, %s289
      $region28: #{refine.1} parent=15 // pred_fallthru
        _
      // Predicated region
      $region29: #{refine.1} parent=15 // pred_check
        %p291 = pneg %p128
      $region30: #{refine.1} parent=15 // pred_check_branch
        %293 = sbr.rel (%p291) target = $region32
      $region31: #{refine.1} parent=15 // pred_region
        %p294 = scmp.lt.s32.totalorder %s21, 1
        %s295 = scalar_select %p294, %s21, 1
        %p296 = scmp.lt.s32.totalorder %s22, 0
        %s297 = scalar_select %p296, %s22, 0
        %s298 = smul.addr %s297, 8
        %s299 = smul.addr %s295, 8
        %s300 = sadd.s32 %s298, %s299
        %s301 = smul.addr %s300, 4
        %s302 = scalar_lea.vmem %s3, %s301
      $region32: #{refine.1} parent=15 // pred_fallthru
        _
      // Predicated region
      $region33: #{refine.1} parent=15 // pred_check
        %p303 = pneg %p156
      $region34: #{refine.1} parent=15 // pred_check_branch
        %305 = sbr.rel (%p303) target = $region36
      $region35: #{refine.1} parent=15 // pred_region
        %p306 = scmp.lt.s32.totalorder %s21, 1
        %s307 = scalar_select %p306, %s21, 1
        %p308 = scmp.lt.s32.totalorder %s22, 0
        %s309 = scalar_select %p308, %s22, 0
        %s310 = smul.addr %s309, 2
        %s311 = smul.addr %s307, 2
        %s312 = sadd.s32 %s310, %s311
        %s313 = smul.addr %s312, 4
        %s314 = scalar_lea.vmem %s4, %s313
      $region36: #{refine.1} parent=15 // pred_fallthru
        _
    $region16: #{refine.1} parent=5 // pred_fallthru
      _
    %p315 = scmp.le.s32.totalorder 1, %s14
    %p316 = scmp.lt.s32.totalorder %s14, 3
    %p317 = pnand %p315, %p316
    %p318 = pneg %p317
    // Predicated region
    $region37: #{refine.1} parent=5 // pred_check
      _
    $region38: #{refine.1} parent=5 // pred_check_branch
      %320 = sbr.rel (%p317) target = $region40
    $region39: #{refine.1} parent=5 // pred_region
      %s321 = ssub.s32 %s14, 1
      %p322 = scmp.lt.s32.totalorder %s23, 1
      %s323 = scalar_select %p322, %s23, 1
      %s324 = smul.addr %s323, 8
      %s325 = scalar_lea.vmem %s0, %s324
      %p326 = pneg %p52
      %p327 = pneg %p49
      %p328 = scmp.lt.s32.totalorder %s23, 1
      %s329 = scalar_select %p328, %s23, 1
      %s330 = smul.addr %s329, 2
      %s331 = scalar_lea.vmem %s1, %s330
      %p332 = pneg %p78
      %p333 = pneg %p75
      %p334 = scmp.lt.s32.totalorder %s23, 1
      %s335 = scalar_select %p334, %s23, 1
      %p336 = scmp.lt.s32.totalorder %s24, 0
      %s337 = scalar_select %p336, %s24, 0
      %s338 = smul.addr %s337, 8
      %s339 = smul.addr %s335, 8
      %s340 = sadd.s32 %s338, %s339
      %s341 = smul.addr %s340, 4
      %s342 = scalar_lea.vmem %s2, %s341
      %p343 = pneg %p106
      %p344 = pneg %p103
      %p345 = scmp.lt.s32.totalorder %s23, 1
      %s346 = scalar_select %p345, %s23, 1
      %p347 = scmp.lt.s32.totalorder %s24, 0
      %s348 = scalar_select %p347, %s24, 0
      %s349 = smul.addr %s348, 8
      %s350 = smul.addr %s346, 8
      %s351 = sadd.s32 %s349, %s350
      %s352 = smul.addr %s351, 4
      %s353 = scalar_lea.vmem %s3, %s352
      %p354 = pneg %p134
      %p355 = pneg %p131
      %p356 = scmp.lt.s32.totalorder %s23, 1
      %s357 = scalar_select %p356, %s23, 1
      %p358 = scmp.lt.s32.totalorder %s24, 0
      %s359 = scalar_select %p358, %s24, 0
      %s360 = smul.addr %s359, 2
      %s361 = smul.addr %s357, 2
      %s362 = sadd.s32 %s360, %s361
      %s363 = smul.addr %s362, 4
      %s364 = scalar_lea.vmem %s4, %s363
      %p365 = pneg %p162
      %p366 = pneg %p159
      %p367 = pneg %p190
      %p368 = pneg %p187
      %p369 = scmp.lt.s32.totalorder %s23, 1
      %s370 = scalar_select %p369, %s23, 1
      %p371 = scmp.lt.s32.totalorder %s24, 0
      %s372 = scalar_select %p371, %s24, 0
      %s373 = smul.addr %s372, 8
      %s374 = smul.addr %s370, 8
      %s375 = sadd.s32 %s373, %s374
      %s376 = smul.addr %s375, 4
      %s377 = scalar_lea.vmem %s5, %s376
      %p378 = pneg %p218
      %p379 = pneg %p215
      %p380 = scmp.lt.s32.totalorder %s23, 1
      %s381 = scalar_select %p380, %s23, 1
      %p382 = scmp.lt.s32.totalorder %s24, 0
      %s383 = scalar_select %p382, %s24, 0
      %s384 = smul.addr %s383, 8
      %s385 = smul.addr %s381, 8
      %s386 = sadd.s32 %s384, %s385
      %s387 = smul.addr %s386, 4
      %s388 = scalar_lea.vmem %s6, %s387
      %p389 = pneg %p246
      %p390 = pneg %p243
      %p391 = scmp.lt.s32.totalorder %s23, 1
      %s392 = scalar_select %p391, %s23, 1
      %p393 = scmp.lt.s32.totalorder %s24, 0
      %s394 = scalar_select %p393, %s24, 0
      %s395 = smul.addr %s394, 2
      %s396 = smul.addr %s392, 2
      %s397 = sadd.s32 %s395, %s396
      %s398 = smul.addr %s397, 4
      %s399 = scalar_lea.vmem %s7, %s398
      %p400 = scmp.lt.s32.totalorder %s23, 1
      %s401 = scalar_select %p400, %s23, 1
      %s402 = smul.addr %s401, 8
      %s403 = scalar_lea.vmem %s0, %s402
      %p404 = scmp.lt.s32.totalorder %s23, 1
      %s405 = scalar_select %p404, %s23, 1
      %s406 = smul.addr %s405, 2
      %s407 = scalar_lea.vmem %s1, %s406
      %p408 = scmp.lt.s32.totalorder %s23, 1
      %s409 = scalar_select %p408, %s23, 1
      %p410 = scmp.lt.s32.totalorder %s24, 0
      %s411 = scalar_select %p410, %s24, 0
      %s412 = smul.addr %s411, 8
      %s413 = smul.addr %s409, 8
      %s414 = sadd.s32 %s412, %s413
      %s415 = smul.addr %s414, 4
      %s416 = scalar_lea.vmem %s2, %s415
      %p417 = scmp.lt.s32.totalorder %s23, 1
      %s418 = scalar_select %p417, %s23, 1
      %p419 = scmp.lt.s32.totalorder %s24, 0
      %s420 = scalar_select %p419, %s24, 0
      %s421 = smul.addr %s420, 8
      %s422 = smul.addr %s418, 8
      %s423 = sadd.s32 %s421, %s422
      %s424 = smul.addr %s423, 4
      %s425 = scalar_lea.vmem %s3, %s424
      %p426 = scmp.lt.s32.totalorder %s23, 1
      %s427 = scalar_select %p426, %s23, 1
      %p428 = scmp.lt.s32.totalorder %s24, 0
      %s429 = scalar_select %p428, %s24, 0
      %s430 = smul.addr %s429, 2
      %s431 = smul.addr %s427, 2
      %s432 = sadd.s32 %s430, %s431
      %s433 = smul.addr %s432, 4
      %s434 = scalar_lea.vmem %s4, %s433
      %p435 = scmp.lt.s32.totalorder %s23, 1
      %s436 = scalar_select %p435, %s23, 1
      %p437 = scmp.lt.s32.totalorder %s24, 0
      %s438 = scalar_select %p437, %s24, 0
      %s439 = smul.addr %s438, 8
      %s440 = smul.addr %s436, 8
      %s441 = sadd.s32 %s439, %s440
      %s442 = smul.addr %s441, 4
      %s443 = scalar_lea.vmem %s5, %s442
      %p444 = scmp.lt.s32.totalorder %s23, 1
      %s445 = scalar_select %p444, %s23, 1
      %p446 = scmp.lt.s32.totalorder %s24, 0
      %s447 = scalar_select %p446, %s24, 0
      %s448 = smul.addr %s447, 8
      %s449 = smul.addr %s445, 8
      %s450 = sadd.s32 %s448, %s449
      %s451 = smul.addr %s450, 4
      %s452 = scalar_lea.vmem %s6, %s451
      %p453 = scmp.lt.s32.totalorder %s23, 1
      %s454 = scalar_select %p453, %s23, 1
      %p455 = scmp.lt.s32.totalorder %s24, 0
      %s456 = scalar_select %p455, %s24, 0
      %s457 = smul.addr %s456, 2
      %s458 = smul.addr %s454, 2
      %s459 = sadd.s32 %s457, %s458
      %s460 = smul.addr %s459, 4
      %s461 = scalar_lea.vmem %s7, %s460
      %v462 = vld [vmem:[%s403] sm:$0xff]
      %v463 = vld [vmem:[%s407] sm:$0x3]
      %v464 = vld [vmem:[%s416] sm:$0xff]
      %v465 = vld [vmem:[%s416 + $0x8] sm:$0xff]
      %v466 = vld [vmem:[%s416 + $0x10] sm:$0xff]
      %v467 = vld [vmem:[%s416 + $0x18] sm:$0xff]
      %v469 = vlaneseq
      %v470 = vshrl.u32 %v469, 7
      %v471 = vsub.s32 0, %v470
      %v472 = vrot.slane %v462, %v471
      %v473 = vlaneseq
      %v474 = vshrl.u32 %v473, 7
      %v475 = vsub.s32 1, %v474
      %v476 = vrot.slane %v462, %v475
      %v477 = vlaneseq
      %v478 = vshrl.u32 %v477, 7
      %v479 = vsub.s32 2, %v478
      %v480 = vrot.slane %v462, %v479
      %v481 = vlaneseq
      %v482 = vshrl.u32 %v481, 7
      %v483 = vsub.s32 3, %v482
      %v484 = vrot.slane %v462, %v483
      %v485 = vlaneseq
      %v486 = vshrl.u32 %v485, 7
      %v487 = vsub.s32 4, %v486
      %v488 = vrot.slane %v462, %v487
      %v489 = vlaneseq
      %v490 = vshrl.u32 %v489, 7
      %v491 = vsub.s32 5, %v490
      %v492 = vrot.slane %v462, %v491
      %v493 = vlaneseq
      %v494 = vshrl.u32 %v493, 7
      %v495 = vsub.s32 6, %v494
      %v496 = vrot.slane %v462, %v495
      %v497 = vlaneseq
      %v498 = vshrl.u32 %v497, 7
      %v499 = vsub.s32 7, %v498
      %v500 = vrot.slane %v462, %v499
      %v501 = vcombine.low %v472, %v476
      %v502 = vcombine.low %v480, %v484
      %v503 = vcombine.low %v488, %v492
      %v504 = vcombine.low %v496, %v500
      %v509 = vmul.f32 %v464, %v501
      %v510 = vmul.f32 %v465, %v502
      %v511 = vmul.f32 %v466, %v503
      %v512 = vmul.f32 %v467, %v504
      %513 = vst [vmem:[%s443] sm:$0xff] %v509
      %514 = vst [vmem:[%s443 + $0x8] sm:$0xff] %v510
      %515 = vst [vmem:[%s443 + $0x10] sm:$0xff] %v511
      %516 = vst [vmem:[%s443 + $0x18] sm:$0xff] %v512
      %v517 = vld [vmem:[%s425] sm:$0xff]
      %v518 = vld [vmem:[%s425 + $0x8] sm:$0xff]
      %v519 = vld [vmem:[%s425 + $0x10] sm:$0xff]
      %v520 = vld [vmem:[%s425 + $0x18] sm:$0xff]
      %v521 = vmul.f32 %v517, %v501
      %v522 = vmul.f32 %v518, %v502
      %v523 = vmul.f32 %v519, %v503
      %v524 = vmul.f32 %v520, %v504
      %525 = vst [vmem:[%s452] sm:$0xff] %v521
      %526 = vst [vmem:[%s452 + $0x8] sm:$0xff] %v522
      %527 = vst [vmem:[%s452 + $0x10] sm:$0xff] %v523
      %528 = vst [vmem:[%s452 + $0x18] sm:$0xff] %v524
      %v529 = vld [vmem:[%s434] sm:$0xff]
      %v531 = vlaneseq
      %v532 = vshrl.u32 %v531, 7
      %v533 = vsub.s32 0, %v532
      %v534 = vrot.slane %v463, %v533
      %v535 = vlaneseq
      %v536 = vshrl.u32 %v535, 7
      %v537 = vsub.s32 1, %v536
      %v538 = vrot.slane %v463, %v537
      %v539 = vcombine.low %v534, %v538
      %v541 = vmul.f32 %v529, %v539
      %542 = vst [vmem:[%s461] sm:$0xff] %v541
      %p543 = scmp.lt.s32.totalorder %s23, 1
      %s544 = scalar_select %p543, %s23, 1
      %p545 = scmp.lt.s32.totalorder %s24, 0
      %s546 = scalar_select %p545, %s24, 0
      %s547 = smul.addr %s546, 8
      %s548 = smul.addr %s544, 8
      %s549 = sadd.s32 %s547, %s548
      %s550 = smul.addr %s549, 4
      %s551 = scalar_lea.vmem %s5, %s550
      %p552 = scmp.lt.s32.totalorder %s23, 1
      %s553 = scalar_select %p552, %s23, 1
      %p554 = scmp.lt.s32.totalorder %s24, 0
      %s555 = scalar_select %p554, %s24, 0
      %s556 = smul.addr %s555, 8
      %s557 = smul.addr %s553, 8
      %s558 = sadd.s32 %s556, %s557
      %s559 = smul.addr %s558, 4
      %s560 = scalar_lea.vmem %s6, %s559
      %p561 = scmp.lt.s32.totalorder %s23, 1
      %s562 = scalar_select %p561, %s23, 1
      %p563 = scmp.lt.s32.totalorder %s24, 0
      %s564 = scalar_select %p563, %s24, 0
      %s565 = smul.addr %s564, 2
      %s566 = smul.addr %s562, 2
      %s567 = sadd.s32 %s565, %s566
      %s568 = smul.addr %s567, 4
      %s569 = scalar_lea.vmem %s7, %s568
      // Predicated region
      $region41: #{refine.1} parent=39 // pred_check
        %p570 = pneg %p187
      $region42: #{refine.1} parent=39 // pred_check_branch
        %572 = sbr.rel (%p570) target = $region44
      $region43: #{refine.1} parent=39 // pred_region
        _
      $region44: #{refine.1} parent=39 // pred_fallthru
        _
      // Predicated region
      $region45: #{refine.1} parent=39 // pred_check
        %p573 = pneg %p215
      $region46: #{refine.1} parent=39 // pred_check_branch
        %575 = sbr.rel (%p573) target = $region48
      $region47: #{refine.1} parent=39 // pred_region
        _
      $region48: #{refine.1} parent=39 // pred_fallthru
        _
      // Predicated region
      $region49: #{refine.1} parent=39 // pred_check
        %p576 = pneg %p243
      $region50: #{refine.1} parent=39 // pred_check_branch
        %578 = sbr.rel (%p576) target = $region52
      $region51: #{refine.1} parent=39 // pred_region
        _
      $region52: #{refine.1} parent=39 // pred_fallthru
        _
    $region40: #{refine.1} parent=5 // pred_fallthru
      _
    %p579 = scmp.le.s32.totalorder 2, %s14
    // Predicated region
    $region53: #{refine.1} parent=5 // pred_check
      %p580 = pneg %p579
    $region54: #{refine.1} parent=5 // pred_check_branch
      %582 = sbr.rel (%p580) target = $region56
    $region55: #{refine.1} parent=5 // pred_region
      %s583 = ssub.s32 %s14, 2
      // Predicated region
      $region57: #{refine.1} parent=55 // pred_check
        %p584 = pneg %p193
      $region58: #{refine.1} parent=55 // pred_check_branch
        %586 = sbr.rel (%p584) target = $region60
      $region59: #{refine.1} parent=55 // pred_region
        %p587 = scmp.lt.s32.totalorder %s25, 1
        %s588 = scalar_select %p587, %s25, 1
        %p589 = scmp.lt.s32.totalorder %s26, 0
        %s590 = scalar_select %p589, %s26, 0
        %s591 = smul.addr %s590, 8
        %s592 = smul.addr %s588, 8
        %s593 = sadd.s32 %s591, %s592
        %s594 = smul.addr %s593, 4
        %s595 = scalar_lea.vmem %s5, %s594
      $region60: #{refine.1} parent=55 // pred_fallthru
        _
      // Predicated region
      $region61: #{refine.1} parent=55 // pred_check
        %p596 = pneg %p221
      $region62: #{refine.1} parent=55 // pred_check_branch
        %598 = sbr.rel (%p596) target = $region64
      $region63: #{refine.1} parent=55 // pred_region
        %p599 = scmp.lt.s32.totalorder %s25, 1
        %s600 = scalar_select %p599, %s25, 1
        %p601 = scmp.lt.s32.totalorder %s26, 0
        %s602 = scalar_select %p601, %s26, 0
        %s603 = smul.addr %s602, 8
        %s604 = smul.addr %s600, 8
        %s605 = sadd.s32 %s603, %s604
        %s606 = smul.addr %s605, 4
        %s607 = scalar_lea.vmem %s6, %s606
      $region64: #{refine.1} parent=55 // pred_fallthru
        _
      // Predicated region
      $region65: #{refine.1} parent=55 // pred_check
        %p608 = pneg %p249
      $region66: #{refine.1} parent=55 // pred_check_branch
        %610 = sbr.rel (%p608) target = $region68
      $region67: #{refine.1} parent=55 // pred_region
        %p611 = scmp.lt.s32.totalorder %s25, 1
        %s612 = scalar_select %p611, %s25, 1
        %p613 = scmp.lt.s32.totalorder %s26, 0
        %s614 = scalar_select %p613, %s26, 0
        %s615 = smul.addr %s614, 2
        %s616 = smul.addr %s612, 2
        %s617 = sadd.s32 %s615, %s616
        %s618 = smul.addr %s617, 4
        %s619 = scalar_lea.vmem %s7, %s618
      $region68: #{refine.1} parent=55 // pred_fallthru
        _
    $region56: #{refine.1} parent=5 // pred_fallthru
      _
  $region6: #{refine.1} parent=0 // loop_footer
    %s18 = sadd.s32 1, %s14
  $region7: #{refine.1} parent=0 // loop_footer_branch
    %13 = sbr.rel target = $region3
  $region8: #{refine.1} parent=0 // loop_exit
    _

</llo_original>
